<compile_context>
chip_gen: v5e
topology: v5e:2x2
jax: 0.10.0
libtpu: 0.0.40
codegen_flags: <defaults>
</compile_context>

<pallas_src>
import jax
import jax.numpy as jnp
from jax.experimental import pallas as pl
from jax.experimental.pallas import tpu as pltpu

IN_FEATURES = 1024
OUT_FEATURES = 2
DEFAULT_BATCH_TILE = 1024  # 1024*1024*4B = 4 MiB per x buffer (x2 for pipelining)


def _round_up(n, m):
    return ((n + m - 1) // m) * m


def dense_sigmoid_kernel(x_ref, w_ref, b_ref, o_ref):
    # x_ref: (TB, 1024) VMEM, w_ref: (2, 1024) VMEM (lane-dense, PyTorch layout),
    # b_ref: (2,) SMEM scalars, o_ref: (TB, 2) VMEM.
    x = x_ref[...]                                           # (TB, 1024) f32
    cols = []
    for o in range(OUT_FEATURES):
        # VPU multiply + XLU lane reduction; no MXU dot (N=2 would waste >98%
        # of MXU width and pad the weight tile 64x in VMEM).
        w_o = w_ref[o:o + 1, :]                              # (1, 1024)
        y_o = jnp.sum(x * w_o, axis=-1, keepdims=True) + b_ref[o]   # (TB, 1)
        cols.append(y_o)
    y = jnp.concatenate(cols, axis=-1)                       # (TB, 2)
    # sigmoid(y) = rcp(1 + exp(-y)); exp and approx-rcp both run on the EUP slot.
    o_ref[...] = pl.reciprocal(1.0 + jnp.exp(-y), approx=True).astype(o_ref.dtype)


def my_pt_rnn_model_forward(x, w, b, *, batch_tile=DEFAULT_BATCH_TILE):
    """x: [B, 1024] f32, w: [2, 1024] f32 (nn.Linear layout), b: [2] f32 -> [B, 2]."""
    B = x.shape[0]
    # Batch tile: multiple of 8 (sublane rule), capped for VMEM headroom on v7x.
    tb = min(batch_tile, _round_up(B, 8))
    b_pad = _round_up(B, tb)
    if b_pad != B:
        x = jnp.pad(x, ((0, b_pad - B), (0, 0)))  # padded rows sliced off below

    out = pl.pallas_call(
        dense_sigmoid_kernel,
        out_shape=jax.ShapeDtypeStruct((b_pad, OUT_FEATURES), jnp.float32),
        grid=(b_pad // tb,),
        in_specs=[
            pl.BlockSpec((tb, IN_FEATURES), lambda i: (i, 0)),            # x tile
            pl.BlockSpec((OUT_FEATURES, IN_FEATURES), lambda i: (0, 0)),  # weight (resident)
            pl.BlockSpec(memory_space=pltpu.MemorySpace.SMEM),            # bias scalars
        ],
        out_specs=pl.BlockSpec((tb, OUT_FEATURES), lambda i: (i, 0)),
        compiler_params=pltpu.CompilerParams(
            dimension_semantics=("parallel",),       # independent batch tiles (2 TCs on v7x)
            vmem_limit_bytes=32 * 1024 * 1024,       # above v5e's 16 MiB scoped default
        ),
    )(x, w, b)
    return out[:B]


if __name__ == "__main__":
    key = jax.random.PRNGKey(0)
    k_x, k_w, k_b = jax.random.split(key, 3)

    batch = 8
    x = jax.random.normal(k_x, (batch, IN_FEATURES), dtype=jnp.float32)

    # Deterministic parameter init mimicking nn.Linear defaults:
    # uniform(-1/sqrt(fan_in), 1/sqrt(fan_in)) for both weight and bias.
    bound = 1.0 / jnp.sqrt(jnp.float32(IN_FEATURES))
    # Keep the PyTorch [out, in] layout (lane-dense along K) — no transpose needed.
    w = jax.random.uniform(
        k_w, (OUT_FEATURES, IN_FEATURES), dtype=jnp.float32,
        minval=-bound, maxval=bound)
    b = jax.random.uniform(
        k_b, (OUT_FEATURES,), dtype=jnp.float32, minval=-bound, maxval=bound)

    out = my_pt_rnn_model_forward(x, w, b)
    out = jax.block_until_ready(out)

    # Cross-check against plain JAX reference.
    ref = jax.nn.sigmoid(x @ w.T + b)
    assert out.shape == (batch, OUT_FEATURES)
    # Tolerance loosened slightly for the EUP approximate reciprocal (~2^-12 rel err
    # on a value bounded in [0, 1]).
    assert jnp.allclose(out, ref, atol=2e-3, rtol=0.0), float(jnp.max(jnp.abs(out - ref)))

    print("KERNEL_OK")
</pallas_src>

<mosaic_0001>
module attributes {stable_mosaic.version = 11 : i64} {
  func.func @dense_sigmoid_kernel(%arg0: i32, %arg1: memref<8x1024xf32, #tpu.memory_space<vmem>>, %arg2: memref<2x1024xf32, #tpu.memory_space<vmem>>, %arg3: memref<2xf32, #tpu.memory_space<smem>>, %arg4: memref<8x2xf32, #tpu.memory_space<vmem>>) attributes {dimension_semantics = [#tpu.dimension_semantics<parallel>], iteration_bounds = array<i64: 1>, scalar_prefetch = 0 : i64, scratch_operands = 0 : i64, tpu.core_type = #tpu.core_type<tc>, window_params = [{transform_indices = @transform_0, window_bounds = array<i64: 8, 1024>}, {pipeline_mode = #tpu.pipeline_mode<synchronous>, transform_indices = @transform_1, window_bounds = array<i64: 2, 1024>}, {transform_indices = @transform_2, window_bounds = array<i64: 2>}, {transform_indices = @transform_3, window_bounds = array<i64: 8, 2>}]} {
    %c0 = arith.constant 0 : index
    %c0_0 = arith.constant 0 : index
    %0 = vector.load %arg1[%c0, %c0_0] : memref<8x1024xf32, #tpu.memory_space<vmem>>, vector<8x1024xf32>
    %c0_1 = arith.constant 0 : index
    %c0_2 = arith.constant 0 : index
    %1 = vector.load %arg2[%c0_1, %c0_2] : memref<2x1024xf32, #tpu.memory_space<vmem>>, vector<1x1024xf32>
    %2 = vector.broadcast %1 : vector<1x1024xf32> to vector<8x1024xf32>
    %3 = arith.mulf %0, %2 : vector<8x1024xf32>
    %cst = arith.constant dense<0.000000e+00> : vector<8xf32>
    %4 = vector.multi_reduction <add>, %3, %cst [1] : vector<8x1024xf32> to vector<8xf32>
    %5 = vector.shape_cast %4 : vector<8xf32> to vector<8x1xf32>
    %c0_3 = arith.constant 0 : index
    %6 = memref.load %arg3[%c0_3] : memref<2xf32, #tpu.memory_space<smem>>
    %7 = vector.broadcast %6 : f32 to vector<8x1xf32>
    %8 = arith.addf %5, %7 : vector<8x1xf32>
    %c1 = arith.constant 1 : index
    %c0_4 = arith.constant 0 : index
    %9 = vector.load %arg2[%c1, %c0_4] : memref<2x1024xf32, #tpu.memory_space<vmem>>, vector<1x1024xf32>
    %10 = vector.broadcast %9 : vector<1x1024xf32> to vector<8x1024xf32>
    %11 = arith.mulf %0, %10 : vector<8x1024xf32>
    %cst_5 = arith.constant dense<0.000000e+00> : vector<8xf32>
    %12 = vector.multi_reduction <add>, %11, %cst_5 [1] : vector<8x1024xf32> to vector<8xf32>
    %13 = vector.shape_cast %12 : vector<8xf32> to vector<8x1xf32>
    %c1_6 = arith.constant 1 : index
    %14 = memref.load %arg3[%c1_6] : memref<2xf32, #tpu.memory_space<smem>>
    %15 = vector.broadcast %14 : f32 to vector<8x1xf32>
    %16 = arith.addf %13, %15 : vector<8x1xf32>
    %17 = tpu.concatenate %8, %16 in 1 : vector<8x1xf32>, vector<8x1xf32> -> vector<8x2xf32>
    %cst_7 = arith.constant 0.000000e+00 : f32
    %18 = vector.broadcast %cst_7 : f32 to vector<8x2xf32>
    %19 = arith.subf %18, %17 : vector<8x2xf32>
    %20 = math.exp %19 : vector<8x2xf32>
    %cst_8 = arith.constant 1.000000e+00 : f32
    %21 = vector.broadcast %cst_8 : f32 to vector<8x2xf32>
    %22 = arith.addf %21, %20 : vector<8x2xf32>
    %23 = tpu.reciprocal %22 {approx = true} : vector<8x2xf32> -> vector<8x2xf32>
    %c0_9 = arith.constant 0 : index
    %c0_10 = arith.constant 0 : index
    %24 = vector.load %arg4[%c0_9, %c0_10] : memref<8x2xf32, #tpu.memory_space<vmem>>, vector<8x2xf32>
    tpu.vector_store %arg4[%c0_9, %c0_10], %23 {strides = array<i32>} : memref<8x2xf32, #tpu.memory_space<vmem>>, vector<8x2xf32>,
    return
  }
  func.func @transform_0(%arg0: i32) -> (i32, i32) {
    %c0_i32 = arith.constant 0 : i32
    %c0_i32_0 = arith.constant 0 : i32
    return %arg0, %c0_i32 : i32, i32
  }
  func.func @transform_1(%arg0: i32) -> (i32, i32) {
    %c0_i32 = arith.constant 0 : i32
    %c0_i32_0 = arith.constant 0 : i32
    %c0_i32_1 = arith.constant 0 : i32
    return %c0_i32, %c0_i32_0 : i32, i32
  }
  func.func @transform_2(%arg0: i32) -> i32 {
    %c0_i32 = arith.constant 0 : i32
    %c0_i32_0 = arith.constant 0 : i32
    return %c0_i32 : i32
  }
  func.func @transform_3(%arg0: i32) -> (i32, i32) {
    %c0_i32 = arith.constant 0 : i32
    %c0_i32_0 = arith.constant 0 : i32
    return %arg0, %c0_i32 : i32, i32
  }
}

</mosaic_0001>

<llo_original>
// kernel: tpu_custom_call.1
$region0: #{tpu_custom_call.1}
  #allocation0 [shape = 'u32[]', space=smem, size = 0x4, offset = 0x4, fixed_abs, tag = 'smem constant byte address 0x4 - core index']
  #allocation1 [shape = 'u32[72,128]{1,0:T(1,128)}', space=vmem, size = 0x9000, scoped, tag = 'internal scratch']
  %s0 = inlined_call_operand.hbm [shape: f32[8,1024], index: 0, kind: input, shape index: {}]
  %s1 = inlined_call_operand.hbm [shape: f32[2,1024], index: 1, kind: input, shape index: {}]
  %s2 = inlined_call_operand.vmem [shape: f32[2], index: 2, kind: input, shape index: {}]
  %s3 = inlined_call_operand.vmem [shape: f32[8,2], index: 3, kind: output, shape index: {}]
  %s4 = sld [smem:[#allocation0]]
  $region34: #{tpu_custom_call.1} parent=0
    _
  %s6 = ssub.s32 1, %s4
  %s7 = scalar_select 0, %s6, %s4
  $region1: #{tpu_custom_call.1} parent=0
    #allocation2 [shape = 'u8[32768]{0}', space=vmem, size = 0x8000, scoped, tag = 'input window, operand 0, single buffered']
    #allocation3 [shape = 's32[1]{0}', space=sflag, size = 0x4, scoped, tag = 'scoped memory for tpu_custom_call.1']
    #allocation4 [shape = 's32[1]{0}', space=sflag, size = 0x4, scoped, tag = 'scoped memory for tpu_custom_call.1']
    #allocation5 [shape = 'u8[8192]{0}', space=vmem, size = 0x2000, scoped, tag = 'input window, operand 1, single buffered']
    #allocation6 [shape = 's32[1]{0}', space=sflag, size = 0x4, scoped, tag = 'scoped memory for tpu_custom_call.1']
    #allocation7 [shape = 'u8[512]{0}', space=smem, size = 0x200, scoped, tag = 'input window, operand 2, single buffered']
    %8 = vsyncpa [#allocation3], 0
    %9 = vsyncpa [#allocation6], 0
    %10 = vsyncpa [#allocation4], 0
    // Predicated region
    $region2: #{tpu_custom_call.1} parent=1 // pred_check
      _
    $region3: #{tpu_custom_call.1} parent=1 // pred_check_branch
      %12 = sbr.rel (0) target = $region5
    $region4: #{tpu_custom_call.1} parent=1 // pred_region
      %14 = vsyncadd [#allocation3], 0
      %s16 = sshll.u32 %s0, 4
      %s17 = int_to_ptr.hbm [resolvable:$true] %s16
      %s18 = sshll.u32 [#allocation2], 4
      %s19 = int_to_ptr.vmem [resolvable:$true] %s18
      %21 = dma.hbm_to_vmem [thread:$0]  %s17, 1024, %s19, [#allocation3]
    $region5: #{tpu_custom_call.1} parent=1 // pred_fallthru
      _
    // Predicated region
    $region6: #{tpu_custom_call.1} parent=1 // pred_check
      _
    $region7: #{tpu_custom_call.1} parent=1 // pred_check_branch
      %23 = sbr.rel (0) target = $region9
    $region8: #{tpu_custom_call.1} parent=1 // pred_region
      %25 = vsyncadd [#allocation6], 0
      %s27 = sshll.u32 %s1, 4
      %s28 = int_to_ptr.hbm [resolvable:$true] %s27
      %s29 = sshll.u32 [#allocation5], 4
      %s30 = int_to_ptr.vmem [resolvable:$true] %s29
      %32 = dma.hbm_to_vmem [thread:$0]  %s28, 256, %s30, [#allocation6]
    $region9: #{tpu_custom_call.1} parent=1 // pred_fallthru
      _
    // Predicated region
    $region10: #{tpu_custom_call.1} parent=1 // pred_check
      _
    $region11: #{tpu_custom_call.1} parent=1 // pred_check_branch
      %34 = sbr.rel (0) target = $region13
    $region12: #{tpu_custom_call.1} parent=1 // pred_region
      %36 = vsyncadd [#allocation4], 0
      %s38 = sshll.u32 %s2, 4
      %s39 = int_to_ptr.vmem [resolvable:$true] %s38
      %41 = dma.vmem_to_smem %s39, 16, [#allocation7], [#allocation4]
    $region13: #{tpu_custom_call.1} parent=1 // pred_fallthru
      _
    // Predicated region
    $region14: #{tpu_custom_call.1} parent=1 // pred_check
      _
    $region15: #{tpu_custom_call.1} parent=1 // pred_check_branch
      %43 = sbr.rel (0) target = $region17
    $region16: #{tpu_custom_call.1} parent=1 // pred_region
      %45 = dma.done [#allocation3], 1024
    $region17: #{tpu_custom_call.1} parent=1 // pred_fallthru
      _
    // Predicated region
    $region18: #{tpu_custom_call.1} parent=1 // pred_check
      _
    $region19: #{tpu_custom_call.1} parent=1 // pred_check_branch
      %47 = sbr.rel (0) target = $region21
    $region20: #{tpu_custom_call.1} parent=1 // pred_region
      %49 = dma.done [#allocation6], 256
    $region21: #{tpu_custom_call.1} parent=1 // pred_fallthru
      _
    // Predicated region
    $region22: #{tpu_custom_call.1} parent=1 // pred_check
      _
    $region23: #{tpu_custom_call.1} parent=1 // pred_check_branch
      %51 = sbr.rel (0) target = $region25
    $region24: #{tpu_custom_call.1} parent=1 // pred_region
      %53 = dma.done [#allocation4], 16
    $region25: #{tpu_custom_call.1} parent=1 // pred_fallthru
      _
    %54 = sfence
    %v55 = vld [vmem:[#allocation2] sm:$0xff]
    %v56 = vld [vmem:[#allocation2 + $0x8] sm:$0xff]
    %v57 = vld [vmem:[#allocation2 + $0x10] sm:$0xff]
    %v58 = vld [vmem:[#allocation2 + $0x18] sm:$0xff]
    %v59 = vld [vmem:[#allocation2 + $0x20] sm:$0xff]
    %v60 = vld [vmem:[#allocation2 + $0x28] sm:$0xff]
    %v61 = vld [vmem:[#allocation2 + $0x30] sm:$0xff]
    %v62 = vld [vmem:[#allocation2 + $0x38] sm:$0xff]
    %v63 = vld [vmem:[#allocation5] ss:$2 sm:$0xff]
    %v65 = vperm.slane %v63, 0
    %v66 = vperm.slane %v63, 1
    %v67 = vperm.slane %v63, 2
    %v68 = vperm.slane %v63, 3
    %v69 = vperm.slane %v63, 4
    %v70 = vperm.slane %v63, 5
    %v71 = vperm.slane %v63, 6
    %v72 = vperm.slane %v63, 7
    %v81 = vmul.f32 %v55, %v65
    %v82 = vmul.f32 %v56, %v66
    %v83 = vmul.f32 %v57, %v67
    %v84 = vmul.f32 %v58, %v68
    %v85 = vmul.f32 %v59, %v69
    %v86 = vmul.f32 %v60, %v70
    %v87 = vmul.f32 %v61, %v71
    %v88 = vmul.f32 %v62, %v72
    %v89 = vadd.f32 %v81, %v82
    %v90 = vadd.f32 %v89, %v83
    %v91 = vadd.f32 %v90, %v84
    %v92 = vadd.f32 %v91, %v85
    %v93 = vadd.f32 %v92, %v86
    %v94 = vadd.f32 %v93, %v87
    %v95 = vadd.f32 %v94, %v88
    %96 = vadd.xlane.f32.xlu0 %v95
    %v97 = vpop.xlane.xlu0 %96
    %s98 = sld [smem:[#allocation7]]
    %v99 = vstv %s98
    %v100 = vadd.f32 %v97, %v99
    %s101 = scalar_lea.vmem [#allocation5], 1
    %v102 = vld [vmem:[%s101] ss:$2 sm:$0xff]
    %v104 = vperm.slane %v102, 0
    %v105 = vperm.slane %v102, 1
    %v106 = vperm.slane %v102, 2
    %v107 = vperm.slane %v102, 3
    %v108 = vperm.slane %v102, 4
    %v109 = vperm.slane %v102, 5
    %v110 = vperm.slane %v102, 6
    %v111 = vperm.slane %v102, 7
    %v120 = vmul.f32 %v55, %v104
    %v121 = vmul.f32 %v56, %v105
    %v122 = vmul.f32 %v57, %v106
    %v123 = vmul.f32 %v58, %v107
    %v124 = vmul.f32 %v59, %v108
    %v125 = vmul.f32 %v60, %v109
    %v126 = vmul.f32 %v61, %v110
    %v127 = vmul.f32 %v62, %v111
    %v128 = vadd.f32 %v120, %v121
    %v129 = vadd.f32 %v128, %v122
    %v130 = vadd.f32 %v129, %v123
    %v131 = vadd.f32 %v130, %v124
    %v132 = vadd.f32 %v131, %v125
    %v133 = vadd.f32 %v132, %v126
    %v134 = vadd.f32 %v133, %v127
    %135 = vadd.xlane.f32.xlu0 %v134
    %v136 = vpop.xlane.xlu0 %135
    %s137 = sld [smem:[#allocation7 + $0x1]]
    %v138 = vstv %s137
    %v139 = vadd.f32 %v136, %v138
    %vm140 = vcmask 7168
    %v141 = vsel %vm140, %v100, %v139
    %v142 = vsub.f32 0.0, %v141
    %v143 = vmul.f32 %v142, 1.442695
    %v144 = vpow.pop %v143
    %v145 = vadd.f32 %v144, 1.0
    %v146 = vrcp.pop %v145
    %vm147 = vcmask 15360
    %148 = vst.msk [vmem:[%s3] sm:$0xff] %vm147, %v146
    // Predicated region
    $region26: #{tpu_custom_call.1} parent=1 // pred_check
      _
    $region27: #{tpu_custom_call.1} parent=1 // pred_check_branch
      %150 = sbr.rel (0) target = $region29
    $region28: #{tpu_custom_call.1} parent=1 // pred_region
      _
    $region29: #{tpu_custom_call.1} parent=1 // pred_fallthru
      _
    // Predicated region
    $region30: #{tpu_custom_call.1} parent=1 // pred_check
      _
    $region31: #{tpu_custom_call.1} parent=1 // pred_check_branch
      %152 = sbr.rel (0) target = $region33
    $region32: #{tpu_custom_call.1} parent=1 // pred_region
      _
    $region33: #{tpu_custom_call.1} parent=1 // pred_fallthru
      _
    %153 = vsyncpa [#allocation3], 1
    %154 = vsyncpa [#allocation6], 1
    %155 = vsyncpa [#allocation4], 1

</llo_original>
